<compile_context>
chip_gen: v5e
topology: v5e:2x2
jax: 0.10.0
libtpu: 0.0.40
codegen_flags: <defaults>
</compile_context>

<pallas_src>
import functools

import jax
import jax.numpy as jnp
from jax.experimental import pallas as pl
from jax.experimental.pallas import tpu as pltpu  # noqa: F401  (TPU backend namespace)

LANE = 128  # TPU lane width; last dims are padded to a multiple of this.


def _pad_last(a, mult):
    """Zero-pad the last dim of `a` up to a multiple of `mult`."""
    pad = (-a.shape[-1]) % mult
    if pad == 0:
        return a
    widths = [(0, 0)] * (a.ndim - 1) + [(0, pad)]
    return jnp.pad(a, widths)


def _pad_axis0(a, mult):
    """Zero-pad the first dim of `a` up to a multiple of `mult`."""
    pad = (-a.shape[0]) % mult
    if pad == 0:
        return a
    widths = [(0, pad)] + [(0, 0)] * (a.ndim - 1)
    return jnp.pad(a, widths)


def _gcn_fused_kernel(x_ref, adj_ref, w1_ref, b1_ref, w2_ref, b2_ref, o_ref):
    """Fused 2-layer GCN. Everything lives in VMEM for the single invocation."""
    adj = adj_ref[...]

    # ---- Layer 1: h = relu(adj @ (x @ W1) + b1) ----
    s1 = jnp.dot(x_ref[...], w1_ref[...], preferred_element_type=jnp.float32)
    h = jnp.dot(adj, s1, preferred_element_type=jnp.float32) + b1_ref[...]
    h = jnp.maximum(h, 0.0)  # hidden activation stays resident in VMEM/vregs

    # ---- Layer 2: y = adj @ (h @ W2) + b2 ----
    s2 = jnp.dot(h, w2_ref[...], preferred_element_type=jnp.float32)
    y = jnp.dot(adj, s2, preferred_element_type=jnp.float32) + b2_ref[...]

    o_ref[...] = y.astype(o_ref.dtype)


def gcn_forward(x, adj, params):
    """Fused 2-layer GCN forward: relu(adj @ (x@W1) + b1) -> adj @ (.@W2) + b2.

    Whole problem (64x64 adj, 128-wide padded features) fits comfortably in
    VMEM, so we use full-array blocks and an empty grid (single invocation);
    the fusion removes the HBM round-trip of h and a second kernel launch.
    """
    n, nfeat = x.shape
    w1, b1, w2, b2 = params
    nhid = w1.shape[1]
    nclass = w2.shape[1]

    # Lane-dense zero padding of all feature dims (exact: padded columns are
    # zero through both layers and get sliced off below).
    x_p = _pad_last(x, LANE)                               # (N, F_p)
    w1_p = _pad_last(_pad_axis0(w1, LANE), LANE)           # (F_p, H_p)
    b1_p = _pad_last(b1.reshape(1, nhid), LANE)            # (1, H_p)
    w2_p = _pad_last(_pad_axis0(w2, LANE), LANE)           # (H_p, C_p)
    b2_p = _pad_last(b2.reshape(1, nclass), LANE)          # (1, C_p)

    f_p = x_p.shape[1]
    h_p = w1_p.shape[1]
    c_p = w2_p.shape[1]

    flops = 2 * n * (f_p * h_p + n * h_p + h_p * c_p + n * c_p)
    bytes_accessed = 4 * (
        x_p.size + adj.size + w1_p.size + b1_p.size + w2_p.size + b2_p.size + n * c_p
    )

    out_p = pl.pallas_call(
        _gcn_fused_kernel,
        out_shape=jax.ShapeDtypeStruct((n, c_p), jnp.float32),
        in_specs=[
            pl.BlockSpec(x_p.shape, lambda: (0, 0)),
            pl.BlockSpec(adj.shape, lambda: (0, 0)),
            pl.BlockSpec(w1_p.shape, lambda: (0, 0)),
            pl.BlockSpec(b1_p.shape, lambda: (0, 0)),
            pl.BlockSpec(w2_p.shape, lambda: (0, 0)),
            pl.BlockSpec(b2_p.shape, lambda: (0, 0)),
        ],
        out_specs=pl.BlockSpec((n, c_p), lambda: (0, 0)),
        cost_estimate=pl.CostEstimate(
            flops=flops, transcendentals=0, bytes_accessed=bytes_accessed
        ),
    )(x_p, adj, w1_p, b1_p, w2_p, b2_p)

    return out_p[:, :nclass]


def init_params(key, nfeat, nhid, nclass):
    """Deterministic Kipf-style uniform(-stdv, stdv) init."""
    k1, k2, k3, k4 = jax.random.split(key, 4)
    stdv1 = 1.0 / jnp.sqrt(nhid)
    stdv2 = 1.0 / jnp.sqrt(nclass)
    w1 = jax.random.uniform(k1, (nfeat, nhid), jnp.float32, -stdv1, stdv1)
    b1 = jax.random.uniform(k2, (nhid,), jnp.float32, -stdv1, stdv1)
    w2 = jax.random.uniform(k3, (nhid, nclass), jnp.float32, -stdv2, stdv2)
    b2 = jax.random.uniform(k4, (nclass,), jnp.float32, -stdv2, stdv2)
    return w1, b1, w2, b2


def reference_forward(x, adj, params):
    w1, b1, w2, b2 = params
    h = jnp.maximum(adj @ (x @ w1) + b1, 0.0)
    return adj @ (h @ w2) + b2


if __name__ == "__main__":
    key = jax.random.PRNGKey(0)
    kx, kadj, kp = jax.random.split(key, 3)

    N, nfeat, nhid, nclass = 64, 32, 32, 16

    # Node features.
    x = jax.random.normal(kx, (N, nfeat), jnp.float32)

    # Symmetric normalized adjacency with self-loops (dense; original was sparse).
    a = (jax.random.uniform(kadj, (N, N)) < 0.1).astype(jnp.float32)
    a = jnp.maximum(a, a.T) + jnp.eye(N, dtype=jnp.float32)
    deg = jnp.sum(a, axis=1)
    d_inv_sqrt = 1.0 / jnp.sqrt(deg)
    adj = a * d_inv_sqrt[:, None] * d_inv_sqrt[None, :]

    params = init_params(kp, nfeat, nhid, nclass)

    out = gcn_forward(x, adj, params)
    out = jax.block_until_ready(out)

    ref = reference_forward(x, adj, params)
    assert out.shape == (N, nclass)
    assert jnp.allclose(out, ref, atol=1e-4, rtol=1e-4), "mismatch vs reference"

    print("KERNEL_OK")
</pallas_src>

<mosaic_0001>
module attributes {stable_mosaic.version = 11 : i64} {
  func.func @_gcn_fused_kernel(%arg0: memref<64x128xf32, #tpu.memory_space<vmem>>, %arg1: memref<64x64xf32, #tpu.memory_space<vmem>>, %arg2: memref<128x128xf32, #tpu.memory_space<vmem>>, %arg3: memref<1x128xf32, #tpu.memory_space<vmem>>, %arg4: memref<128x128xf32, #tpu.memory_space<vmem>>, %arg5: memref<1x128xf32, #tpu.memory_space<vmem>>, %arg6: memref<64x128xf32, #tpu.memory_space<vmem>>) attributes {dimension_semantics = [], scalar_prefetch = 0 : i64, scratch_operands = 0 : i64, tpu.core_type = #tpu.core_type<tc>} {
    %c0 = arith.constant 0 : index
    %c0_0 = arith.constant 0 : index
    %0 = vector.load %arg1[%c0, %c0_0] : memref<64x64xf32, #tpu.memory_space<vmem>>, vector<64x64xf32>
    %c0_1 = arith.constant 0 : index
    %c0_2 = arith.constant 0 : index
    %1 = vector.load %arg0[%c0_1, %c0_2] : memref<64x128xf32, #tpu.memory_space<vmem>>, vector<64x128xf32>
    %c0_3 = arith.constant 0 : index
    %c0_4 = arith.constant 0 : index
    %2 = vector.load %arg2[%c0_3, %c0_4] : memref<128x128xf32, #tpu.memory_space<vmem>>, vector<128x128xf32>
    %cst = arith.constant dense<0.000000e+00> : vector<64x128xf32>
    %3 = tpu.matmul %1, %2, %cst {dimension_numbers = #tpu.dot_dimension_numbers<[1], [0], [0], [1], [0, 0, 1, 1], [], []>} : vector<64x128xf32>, vector<128x128xf32>, vector<64x128xf32> -> vector<64x128xf32>
    %cst_5 = arith.constant dense<0.000000e+00> : vector<64x128xf32>
    %4 = tpu.matmul %0, %3, %cst_5 {dimension_numbers = #tpu.dot_dimension_numbers<[1], [0], [0], [1], [0, 0, 1, 1], [], []>} : vector<64x64xf32>, vector<64x128xf32>, vector<64x128xf32> -> vector<64x128xf32>
    %c0_6 = arith.constant 0 : index
    %c0_7 = arith.constant 0 : index
    %5 = vector.load %arg3[%c0_6, %c0_7] : memref<1x128xf32, #tpu.memory_space<vmem>>, vector<1x128xf32>
    %6 = vector.broadcast %5 : vector<1x128xf32> to vector<64x128xf32>
    %7 = arith.addf %4, %6 : vector<64x128xf32>
    %cst_8 = arith.constant 0.000000e+00 : f32
    %8 = vector.broadcast %cst_8 : f32 to vector<64x128xf32>
    %9 = arith.maximumf %7, %8 : vector<64x128xf32>
    %c0_9 = arith.constant 0 : index
    %c0_10 = arith.constant 0 : index
    %10 = vector.load %arg4[%c0_9, %c0_10] : memref<128x128xf32, #tpu.memory_space<vmem>>, vector<128x128xf32>
    %cst_11 = arith.constant dense<0.000000e+00> : vector<64x128xf32>
    %11 = tpu.matmul %9, %10, %cst_11 {dimension_numbers = #tpu.dot_dimension_numbers<[1], [0], [0], [1], [0, 0, 1, 1], [], []>} : vector<64x128xf32>, vector<128x128xf32>, vector<64x128xf32> -> vector<64x128xf32>
    %cst_12 = arith.constant dense<0.000000e+00> : vector<64x128xf32>
    %12 = tpu.matmul %0, %11, %cst_12 {dimension_numbers = #tpu.dot_dimension_numbers<[1], [0], [0], [1], [0, 0, 1, 1], [], []>} : vector<64x64xf32>, vector<64x128xf32>, vector<64x128xf32> -> vector<64x128xf32>
    %c0_13 = arith.constant 0 : index
    %c0_14 = arith.constant 0 : index
    %13 = vector.load %arg5[%c0_13, %c0_14] : memref<1x128xf32, #tpu.memory_space<vmem>>, vector<1x128xf32>
    %14 = vector.broadcast %13 : vector<1x128xf32> to vector<64x128xf32>
    %15 = arith.addf %12, %14 : vector<64x128xf32>
    %c0_15 = arith.constant 0 : index
    %c0_16 = arith.constant 0 : index
    %16 = vector.load %arg6[%c0_15, %c0_16] : memref<64x128xf32, #tpu.memory_space<vmem>>, vector<64x128xf32>
    tpu.vector_store %arg6[%c0_15, %c0_16], %15 {strides = array<i32>} : memref<64x128xf32, #tpu.memory_space<vmem>>, vector<64x128xf32>,
    return
  }
}

</mosaic_0001>

<llo_original>
// kernel: tpu_custom_call.1
$region0: #{tpu_custom_call.1}
  #allocation0 [shape = 'u32[]', space=smem, size = 0x4, offset = 0x4, fixed_abs, tag = 'smem constant byte address 0x4 - core index']
  #allocation1 [shape = 'u32[72,128]{1,0:T(1,128)}', space=vmem, size = 0x9000, scoped, tag = 'internal scratch']
  %s0 = inlined_call_operand.hbm [shape: f32[64,128], index: 0, kind: input, shape index: {}]
  %s1 = inlined_call_operand.hbm [shape: f32[64,64], index: 1, kind: input, shape index: {}]
  %s2 = inlined_call_operand.hbm [shape: f32[128,128], index: 2, kind: input, shape index: {}]
  %s3 = inlined_call_operand.vmem [shape: f32[1,128], index: 3, kind: input, shape index: {}]
  %s4 = inlined_call_operand.hbm [shape: f32[128,128], index: 4, kind: input, shape index: {}]
  %s5 = inlined_call_operand.vmem [shape: f32[1,128], index: 5, kind: input, shape index: {}]
  %s6 = inlined_call_operand.hbm [shape: f32[64,128], index: 6, kind: output, shape index: {}]
  %s7 = sld [smem:[#allocation0]]
  $region50: #{tpu_custom_call.1} parent=0
    _
  %s9 = ssub.s32 1, %s7
  %s10 = scalar_select 0, %s9, %s7
  $region1: #{tpu_custom_call.1} parent=0
    #allocation2 [shape = 'u8[32768]{0}', space=vmem, size = 0x8000, scoped, tag = 'input window, operand 0, single buffered']
    #allocation3 [shape = 's32[1]{0}', space=sflag, size = 0x4, scoped, tag = 'scoped memory for tpu_custom_call.1']
    #allocation4 [shape = 's32[1]{0}', space=sflag, size = 0x4, scoped, tag = 'scoped memory for tpu_custom_call.1']
    #allocation5 [shape = 'u8[32768]{0}', space=vmem, size = 0x8000, scoped, tag = 'input window, operand 1, single buffered']
    #allocation6 [shape = 's32[1]{0}', space=sflag, size = 0x4, scoped, tag = 'scoped memory for tpu_custom_call.1']
    #allocation7 [shape = 'u8[65536]{0}', space=vmem, size = 0x10000, scoped, tag = 'input window, operand 2, single buffered']
    #allocation8 [shape = 'u8[65536]{0}', space=vmem, size = 0x10000, scoped, tag = 'input window, operand 4, single buffered']
    #allocation9 [shape = 's32[1]{0}', space=sflag, size = 0x4, scoped, tag = 'scoped memory for tpu_custom_call.1']
    #allocation10 [shape = 'u8[32768]{0}', space=vmem, size = 0x8000, scoped, tag = 'output window, operand 0, single buffered']
    %11 = vsyncpa [#allocation3], 0
    %12 = vsyncpa [#allocation6], 0
    %13 = vsyncpa [#allocation9], 0
    %14 = vsyncpa [#allocation4], 0
    // Predicated region
    $region2: #{tpu_custom_call.1} parent=1 // pred_check
      _
    $region3: #{tpu_custom_call.1} parent=1 // pred_check_branch
      %16 = sbr.rel (0) target = $region5
    $region4: #{tpu_custom_call.1} parent=1 // pred_region
      %18 = vsyncadd [#allocation3], 0
      %s19 = sshll.u32 %s0, 4
      %s20 = int_to_ptr.hbm [resolvable:$true] %s19
      %s21 = sshll.u32 [#allocation2], 4
      %s22 = int_to_ptr.vmem [resolvable:$true] %s21
      %27 = dma.hbm_to_vmem [thread:$0]  %s20, 1024, %s22, [#allocation3], 128, 128, 8
    $region5: #{tpu_custom_call.1} parent=1 // pred_fallthru
      _
    // Predicated region
    $region6: #{tpu_custom_call.1} parent=1 // pred_check
      _
    $region7: #{tpu_custom_call.1} parent=1 // pred_check_branch
      %29 = sbr.rel (0) target = $region9
    $region8: #{tpu_custom_call.1} parent=1 // pred_region
      %31 = vsyncadd [#allocation6], 0
      %s32 = sshll.u32 %s1, 4
      %s33 = int_to_ptr.hbm [resolvable:$true] %s32
      %s34 = sshll.u32 [#allocation5], 4
      %s35 = int_to_ptr.vmem [resolvable:$true] %s34
      %40 = dma.hbm_to_vmem [thread:$0]  %s33, 1024, %s35, [#allocation6], 128, 128, 8
    $region9: #{tpu_custom_call.1} parent=1 // pred_fallthru
      _
    // Predicated region
    $region10: #{tpu_custom_call.1} parent=1 // pred_check
      _
    $region11: #{tpu_custom_call.1} parent=1 // pred_check_branch
      %42 = sbr.rel (0) target = $region13
    $region12: #{tpu_custom_call.1} parent=1 // pred_region
      %44 = vsyncadd [#allocation6], 0
      %s45 = sshll.u32 %s2, 4
      %s46 = int_to_ptr.hbm [resolvable:$true] %s45
      %s47 = sshll.u32 [#allocation7], 4
      %s48 = int_to_ptr.vmem [resolvable:$true] %s47
      %53 = dma.hbm_to_vmem [thread:$0]  %s46, 2048, %s48, [#allocation6], 128, 128, 8
    $region13: #{tpu_custom_call.1} parent=1 // pred_fallthru
      _
    // Predicated region
    $region14: #{tpu_custom_call.1} parent=1 // pred_check
      _
    $region15: #{tpu_custom_call.1} parent=1 // pred_check_branch
      %55 = sbr.rel (0) target = $region17
    $region16: #{tpu_custom_call.1} parent=1 // pred_region
      _
    $region17: #{tpu_custom_call.1} parent=1 // pred_fallthru
      _
    // Predicated region
    $region18: #{tpu_custom_call.1} parent=1 // pred_check
      _
    $region19: #{tpu_custom_call.1} parent=1 // pred_check_branch
      %57 = sbr.rel (0) target = $region21
    $region20: #{tpu_custom_call.1} parent=1 // pred_region
      %59 = vsyncadd [#allocation9], 0
      %s60 = sshll.u32 %s4, 4
      %s61 = int_to_ptr.hbm [resolvable:$true] %s60
      %s62 = sshll.u32 [#allocation8], 4
      %s63 = int_to_ptr.vmem [resolvable:$true] %s62
      %68 = dma.hbm_to_vmem [thread:$0]  %s61, 2048, %s63, [#allocation9], 128, 128, 8
    $region21: #{tpu_custom_call.1} parent=1 // pred_fallthru
      _
    // Predicated region
    $region22: #{tpu_custom_call.1} parent=1 // pred_check
      _
    $region23: #{tpu_custom_call.1} parent=1 // pred_check_branch
      %70 = sbr.rel (0) target = $region25
    $region24: #{tpu_custom_call.1} parent=1 // pred_region
      _
    $region25: #{tpu_custom_call.1} parent=1 // pred_fallthru
      _
    // Predicated region
    $region26: #{tpu_custom_call.1} parent=1 // pred_check
      _
    $region27: #{tpu_custom_call.1} parent=1 // pred_check_branch
      %72 = sbr.rel (0) target = $region29
    $region28: #{tpu_custom_call.1} parent=1 // pred_region
      %74 = dma.done [#allocation3], 1024
    $region29: #{tpu_custom_call.1} parent=1 // pred_fallthru
      _
    // Predicated region
    $region30: #{tpu_custom_call.1} parent=1 // pred_check
      _
    $region31: #{tpu_custom_call.1} parent=1 // pred_check_branch
      %76 = sbr.rel (0) target = $region33
    $region32: #{tpu_custom_call.1} parent=1 // pred_region
      %78 = dma.done [#allocation6], 1024
    $region33: #{tpu_custom_call.1} parent=1 // pred_fallthru
      _
    // Predicated region
    $region34: #{tpu_custom_call.1} parent=1 // pred_check
      _
    $region35: #{tpu_custom_call.1} parent=1 // pred_check_branch
      %80 = sbr.rel (0) target = $region37
    $region36: #{tpu_custom_call.1} parent=1 // pred_region
      %82 = dma.done [#allocation6], 2048
    $region37: #{tpu_custom_call.1} parent=1 // pred_fallthru
      _
    // Predicated region
    $region38: #{tpu_custom_call.1} parent=1 // pred_check
      _
    $region39: #{tpu_custom_call.1} parent=1 // pred_check_branch
      %84 = sbr.rel (0) target = $region41
    $region40: #{tpu_custom_call.1} parent=1 // pred_region
      %86 = dma.done [#allocation9], 2048
    $region41: #{tpu_custom_call.1} parent=1 // pred_fallthru
      _
    %v87 = vld [vmem:[#allocation5] sm:$0xff]
    %v88 = vld [vmem:[#allocation5 + $0x8] sm:$0xff]
    %v89 = vld [vmem:[#allocation5 + $0x10] sm:$0xff]
    %v90 = vld [vmem:[#allocation5 + $0x18] sm:$0xff]
    %v91 = vld [vmem:[#allocation5 + $0x20] sm:$0xff]
    %v92 = vld [vmem:[#allocation5 + $0x28] sm:$0xff]
    %v93 = vld [vmem:[#allocation5 + $0x30] sm:$0xff]
    %v94 = vld [vmem:[#allocation5 + $0x38] sm:$0xff]
    %v95 = vld [vmem:[#allocation2] sm:$0xff]
    %v96 = vld [vmem:[#allocation2 + $0x8] sm:$0xff]
    %v97 = vld [vmem:[#allocation2 + $0x10] sm:$0xff]
    %v98 = vld [vmem:[#allocation2 + $0x18] sm:$0xff]
    %v99 = vld [vmem:[#allocation2 + $0x20] sm:$0xff]
    %v100 = vld [vmem:[#allocation2 + $0x28] sm:$0xff]
    %v101 = vld [vmem:[#allocation2 + $0x30] sm:$0xff]
    %v102 = vld [vmem:[#allocation2 + $0x38] sm:$0xff]
    %v103 = vld [vmem:[#allocation7] sm:$0xff]
    %v104 = vld [vmem:[#allocation7 + $0x8] sm:$0xff]
    %v105 = vld [vmem:[#allocation7 + $0x10] sm:$0xff]
    %v106 = vld [vmem:[#allocation7 + $0x18] sm:$0xff]
    %v107 = vld [vmem:[#allocation7 + $0x20] sm:$0xff]
    %v108 = vld [vmem:[#allocation7 + $0x28] sm:$0xff]
    %v109 = vld [vmem:[#allocation7 + $0x30] sm:$0xff]
    %v110 = vld [vmem:[#allocation7 + $0x38] sm:$0xff]
    %v111 = vld [vmem:[#allocation7 + $0x40] sm:$0xff]
    %v112 = vld [vmem:[#allocation7 + $0x48] sm:$0xff]
    %v113 = vld [vmem:[#allocation7 + $0x50] sm:$0xff]
    %v114 = vld [vmem:[#allocation7 + $0x58] sm:$0xff]
    %v115 = vld [vmem:[#allocation7 + $0x60] sm:$0xff]
    %v116 = vld [vmem:[#allocation7 + $0x68] sm:$0xff]
    %v117 = vld [vmem:[#allocation7 + $0x70] sm:$0xff]
    %v118 = vld [vmem:[#allocation7 + $0x78] sm:$0xff]
    %119 = vmatpush.msra.mxu0 %v118
    %120 = vmatpush.msra.mxu0 %v117
    %121 = vmatpush.msra.mxu0 %v116
    %122 = vmatpush.msra.mxu0 %v115
    %123 = vmatpush.msra.mxu0 %v114
    %124 = vmatpush.msra.mxu0 %v113
    %125 = vmatpush.msra.mxu0 %v112
    %126 = vmatpush.msra.mxu0 %v111
    %127 = vmatpush.msra.mxu0 %v110
    %128 = vmatpush.msra.mxu0 %v109
    %129 = vmatpush.msra.mxu0 %v108
    %130 = vmatpush.msra.mxu0 %v107
    %131 = vmatpush.msra.mxu0 %v106
    %132 = vmatpush.msra.mxu0 %v105
    %133 = vmatpush.msra.mxu0 %v104
    %134 = vmatpush.msra.mxu0 %v103
    %135 = vmatmul.f32.gmra.mxu0 %v95
    %v136 = vpop.f32.mrf.mxu0
    %v137 = vadd.f32 0.0, %v136
    %138 = vmatmul.f32.gmra.mxu0 %v96
    %v139 = vpop.f32.mrf.mxu0
    %v140 = vadd.f32 0.0, %v139
    %141 = vmatmul.f32.gmra.mxu0 %v97
    %v142 = vpop.f32.mrf.mxu0
    %v143 = vadd.f32 0.0, %v142
    %144 = vmatmul.f32.gmra.mxu0 %v98
    %v145 = vpop.f32.mrf.mxu0
    %v146 = vadd.f32 0.0, %v145
    %147 = vmatmul.f32.gmra.mxu0 %v99
    %v148 = vpop.f32.mrf.mxu0
    %v149 = vadd.f32 0.0, %v148
    %150 = vmatmul.f32.gmra.mxu0 %v100
    %v151 = vpop.f32.mrf.mxu0
    %v152 = vadd.f32 0.0, %v151
    %153 = vmatmul.f32.gmra.mxu0 %v101
    %v154 = vpop.f32.mrf.mxu0
    %v155 = vadd.f32 0.0, %v154
    %156 = vmatmul.f32.gmra.mxu0 %v102
    %v157 = vpop.f32.mrf.mxu0
    %v158 = vadd.f32 0.0, %v157
    %159 = vdwg.mxu0
    %v160 = vld [vmem:[%s3] sm:$0x1]
    %v162 = vperm.slane %v160, 0
    %vm164 = vcmask 523264
    %v166 = vsel %vm164, %v87, 0
    %v169 = vsel %vm164, %v88, 0
    %v172 = vsel %vm164, %v89, 0
    %v175 = vsel %vm164, %v90, 0
    %v178 = vsel %vm164, %v91, 0
    %v181 = vsel %vm164, %v92, 0
    %v184 = vsel %vm164, %v93, 0
    %v187 = vsel %vm164, %v94, 0
    %189 = vmatpush.msra.mxu0 0.0
    %190 = vmatpush.msra.mxu0 0.0
    %191 = vmatpush.msra.mxu0 0.0
    %192 = vmatpush.msra.mxu0 0.0
    %193 = vmatpush.msra.mxu0 0.0
    %194 = vmatpush.msra.mxu0 0.0
    %195 = vmatpush.msra.mxu0 0.0
    %196 = vmatpush.msra.mxu0 0.0
    %197 = vmatpush.msra.mxu0 %v158
    %198 = vmatpush.msra.mxu0 %v155
    %199 = vmatpush.msra.mxu0 %v152
    %200 = vmatpush.msra.mxu0 %v149
    %201 = vmatpush.msra.mxu0 %v146
    %202 = vmatpush.msra.mxu0 %v143
    %203 = vmatpush.msra.mxu0 %v140
    %204 = vmatpush.msra.mxu0 %v137
    %205 = vmatmul.f32.gmra.mxu0 %v166
    %v206 = vpop.f32.mrf.mxu0
    %v207 = vadd.f32 %v162, %v206
    %208 = vmatmul.f32.gmra.mxu0 %v169
    %v209 = vpop.f32.mrf.mxu0
    %v210 = vadd.f32 %v162, %v209
    %211 = vmatmul.f32.gmra.mxu0 %v172
    %v212 = vpop.f32.mrf.mxu0
    %v213 = vadd.f32 %v162, %v212
    %214 = vmatmul.f32.gmra.mxu0 %v175
    %v215 = vpop.f32.mrf.mxu0
    %v216 = vadd.f32 %v162, %v215
    %217 = vmatmul.f32.gmra.mxu0 %v178
    %v218 = vpop.f32.mrf.mxu0
    %v219 = vadd.f32 %v162, %v218
    %220 = vmatmul.f32.gmra.mxu0 %v181
    %v221 = vpop.f32.mrf.mxu0
    %v222 = vadd.f32 %v162, %v221
    %223 = vmatmul.f32.gmra.mxu0 %v184
    %v224 = vpop.f32.mrf.mxu0
    %v225 = vadd.f32 %v162, %v224
    %226 = vmatmul.f32.gmra.mxu0 %v187
    %v227 = vpop.f32.mrf.mxu0
    %v228 = vadd.f32 %v162, %v227
    %229 = vdwg.mxu0
    %v230 = vmax.f32 %v207, 0.0
    %v231 = vmax.f32 %v210, 0.0
    %v232 = vmax.f32 %v213, 0.0
    %v233 = vmax.f32 %v216, 0.0
    %v234 = vmax.f32 %v219, 0.0
    %v235 = vmax.f32 %v222, 0.0
    %v236 = vmax.f32 %v225, 0.0
    %v237 = vmax.f32 %v228, 0.0
    %v238 = vld [vmem:[#allocation8] sm:$0xff]
    %v239 = vld [vmem:[#allocation8 + $0x8] sm:$0xff]
    %v240 = vld [vmem:[#allocation8 + $0x10] sm:$0xff]
    %v241 = vld [vmem:[#allocation8 + $0x18] sm:$0xff]
    %v242 = vld [vmem:[#allocation8 + $0x20] sm:$0xff]
    %v243 = vld [vmem:[#allocation8 + $0x28] sm:$0xff]
    %v244 = vld [vmem:[#allocation8 + $0x30] sm:$0xff]
    %v245 = vld [vmem:[#allocation8 + $0x38] sm:$0xff]
    %v246 = vld [vmem:[#allocation8 + $0x40] sm:$0xff]
    %v247 = vld [vmem:[#allocation8 + $0x48] sm:$0xff]
    %v248 = vld [vmem:[#allocation8 + $0x50] sm:$0xff]
    %v249 = vld [vmem:[#allocation8 + $0x58] sm:$0xff]
    %v250 = vld [vmem:[#allocation8 + $0x60] sm:$0xff]
    %v251 = vld [vmem:[#allocation8 + $0x68] sm:$0xff]
    %v252 = vld [vmem:[#allocation8 + $0x70] sm:$0xff]
    %v253 = vld [vmem:[#allocation8 + $0x78] sm:$0xff]
    %254 = vmatpush.msra.mxu0 %v253
    %255 = vmatpush.msra.mxu0 %v252
    %256 = vmatpush.msra.mxu0 %v251
    %257 = vmatpush.msra.mxu0 %v250
    %258 = vmatpush.msra.mxu0 %v249
    %259 = vmatpush.msra.mxu0 %v248
    %260 = vmatpush.msra.mxu0 %v247
    %261 = vmatpush.msra.mxu0 %v246
    %262 = vmatpush.msra.mxu0 %v245
    %263 = vmatpush.msra.mxu0 %v244
    %264 = vmatpush.msra.mxu0 %v243
    %265 = vmatpush.msra.mxu0 %v242
    %266 = vmatpush.msra.mxu0 %v241
    %267 = vmatpush.msra.mxu0 %v240
    %268 = vmatpush.msra.mxu0 %v239
    %269 = vmatpush.msra.mxu0 %v238
    %270 = vmatmul.f32.gmra.mxu0 %v230
    %v271 = vpop.f32.mrf.mxu0
    %v272 = vadd.f32 0.0, %v271
    %273 = vmatmul.f32.gmra.mxu0 %v231
    %v274 = vpop.f32.mrf.mxu0
    %v275 = vadd.f32 0.0, %v274
    %276 = vmatmul.f32.gmra.mxu0 %v232
    %v277 = vpop.f32.mrf.mxu0
    %v278 = vadd.f32 0.0, %v277
    %279 = vmatmul.f32.gmra.mxu0 %v233
    %v280 = vpop.f32.mrf.mxu0
    %v281 = vadd.f32 0.0, %v280
    %282 = vmatmul.f32.gmra.mxu0 %v234
    %v283 = vpop.f32.mrf.mxu0
    %v284 = vadd.f32 0.0, %v283
    %285 = vmatmul.f32.gmra.mxu0 %v235
    %v286 = vpop.f32.mrf.mxu0
    %v287 = vadd.f32 0.0, %v286
    %288 = vmatmul.f32.gmra.mxu0 %v236
    %v289 = vpop.f32.mrf.mxu0
    %v290 = vadd.f32 0.0, %v289
    %291 = vmatmul.f32.gmra.mxu0 %v237
    %v292 = vpop.f32.mrf.mxu0
    %v293 = vadd.f32 0.0, %v292
    %294 = vdwg.mxu0
    %v295 = vld [vmem:[%s5] sm:$0x1]
    %v297 = vperm.slane %v295, 0
    %299 = vmatpush.msra.mxu0 0.0
    %300 = vmatpush.msra.mxu0 0.0
    %301 = vmatpush.msra.mxu0 0.0
    %302 = vmatpush.msra.mxu0 0.0
    %303 = vmatpush.msra.mxu0 0.0
    %304 = vmatpush.msra.mxu0 0.0
    %305 = vmatpush.msra.mxu0 0.0
    %306 = vmatpush.msra.mxu0 0.0
    %307 = vmatpush.msra.mxu0 %v293
    %308 = vmatpush.msra.mxu0 %v290
    %309 = vmatpush.msra.mxu0 %v287
    %310 = vmatpush.msra.mxu0 %v284
    %311 = vmatpush.msra.mxu0 %v281
    %312 = vmatpush.msra.mxu0 %v278
    %313 = vmatpush.msra.mxu0 %v275
    %314 = vmatpush.msra.mxu0 %v272
    %315 = vmatmul.f32.gmra.mxu0 %v166
    %v316 = vpop.f32.mrf.mxu0
    %v317 = vadd.f32 %v297, %v316
    %318 = vmatmul.f32.gmra.mxu0 %v169
    %v319 = vpop.f32.mrf.mxu0
    %v320 = vadd.f32 %v297, %v319
    %321 = vmatmul.f32.gmra.mxu0 %v172
    %v322 = vpop.f32.mrf.mxu0
    %v323 = vadd.f32 %v297, %v322
    %324 = vmatmul.f32.gmra.mxu0 %v175
    %v325 = vpop.f32.mrf.mxu0
    %v326 = vadd.f32 %v297, %v325
    %327 = vmatmul.f32.gmra.mxu0 %v178
    %v328 = vpop.f32.mrf.mxu0
    %v329 = vadd.f32 %v297, %v328
    %330 = vmatmul.f32.gmra.mxu0 %v181
    %v331 = vpop.f32.mrf.mxu0
    %v332 = vadd.f32 %v297, %v331
    %333 = vmatmul.f32.gmra.mxu0 %v184
    %v334 = vpop.f32.mrf.mxu0
    %v335 = vadd.f32 %v297, %v334
    %336 = vmatmul.f32.gmra.mxu0 %v187
    %v337 = vpop.f32.mrf.mxu0
    %v338 = vadd.f32 %v297, %v337
    %339 = vdwg.mxu0
    %340 = vst [vmem:[#allocation10] sm:$0xff] %v317
    %341 = vst [vmem:[#allocation10 + $0x8] sm:$0xff] %v320
    %342 = vst [vmem:[#allocation10 + $0x10] sm:$0xff] %v323
    %343 = vst [vmem:[#allocation10 + $0x18] sm:$0xff] %v326
    %344 = vst [vmem:[#allocation10 + $0x20] sm:$0xff] %v329
    %345 = vst [vmem:[#allocation10 + $0x28] sm:$0xff] %v332
    %346 = vst [vmem:[#allocation10 + $0x30] sm:$0xff] %v335
    %347 = vst [vmem:[#allocation10 + $0x38] sm:$0xff] %v338
    // Predicated region
    $region42: #{tpu_custom_call.1} parent=1 // pred_check
      _
    $region43: #{tpu_custom_call.1} parent=1 // pred_check_branch
      %349 = sbr.rel (0) target = $region45
    $region44: #{tpu_custom_call.1} parent=1 // pred_region
      %351 = vsyncadd [#allocation4], 0
      %s352 = sshll.u32 [#allocation10], 4
      %s353 = int_to_ptr.vmem [resolvable:$true] %s352
      %s354 = sshll.u32 %s6, 4
      %s355 = int_to_ptr.hbm [resolvable:$true] %s354
      %360 = dma.vmem_to_hbm [thread:$0]  %s353, 1024, %s355, [#allocation4], 128, 128, 8
    $region45: #{tpu_custom_call.1} parent=1 // pred_fallthru
      _
    // Predicated region
    $region46: #{tpu_custom_call.1} parent=1 // pred_check
      _
    $region47: #{tpu_custom_call.1} parent=1 // pred_check_branch
      %362 = sbr.rel (0) target = $region49
    $region48: #{tpu_custom_call.1} parent=1 // pred_region
      %364 = dma.done [#allocation4], 1024
    $region49: #{tpu_custom_call.1} parent=1 // pred_fallthru
      _
    %365 = vsyncpa [#allocation3], 1
    %366 = vsyncpa [#allocation6], 1
    %367 = vsyncpa [#allocation9], 1
    %368 = vsyncpa [#allocation4], 1

</llo_original>
